<compile_context>
chip_gen: v7x
topology: tpu7x:2x2x1
jax: 0.10.0
libtpu: 0.0.40
codegen_flags: <defaults>
</compile_context>

<pallas_src>
import math

import jax
import jax.numpy as jnp
from jax.experimental import pallas as pl
from jax.experimental.pallas import tpu as pltpu


def _round_up(x: int, m: int) -> int:
    return ((x + m - 1) // m) * m


def _vectorized_linear_kernel(x_ref, w_ref, b_ref, o_ref, acc_ref):
    # x_ref: (eb, tm, tk)  w_ref: (eb, tk, tn)  b_ref: (eb, 1, tn)
    # o_ref: (eb, tm, tn)  acc_ref: (eb, tm, tn) f32, resident across K steps
    k = pl.program_id(3)

    @pl.when(k == 0)
    def _init():
        acc_ref[...] = jnp.zeros_like(acc_ref)

    # Batched (over the grouped ensemble members) matmul, f32 accumulation.
    acc_ref[...] += jnp.einsum(
        "emk,ekn->emn", x_ref[...], w_ref[...],
        preferred_element_type=jnp.float32)

    @pl.when(k == pl.num_programs(3) - 1)
    def _finalize():
        o_ref[...] = (acc_ref[...] + b_ref[...].astype(jnp.float32)).astype(o_ref.dtype)


def _choose_tiles(e, b, in_f, out_f, bytes_per_el):
    # MXU-friendly tiles; cap at 512 so double-buffered tiles stay well inside
    # v7x's 32 MiB scoped / 64 MiB physical VMEM (plenty of room on v5e/v6e).
    tm = min(512, _round_up(b, 8))
    tk = min(512, _round_up(in_f, 128))
    tn = min(512, _round_up(out_f, 128))
    # Group several ensemble members per grid step when each member's tiles are
    # tiny (otherwise the ~0.35us fixed per-grid-step overhead dominates).
    per_member_bytes = (tm * tk + tk * tn + tm * tn) * bytes_per_el
    eb = int(max(1, min(e, (4 * 1024 * 1024) // max(per_member_bytes, 1))))
    return eb, tm, tn, tk


def vectorized_linear(x: jax.Array, weight: jax.Array, bias: jax.Array,
                      *, compute_dtype=None) -> jax.Array:
    """x @ weight + bias per ensemble member (tiled Pallas TPU kernel).

    x:      (E, B, IN)
    weight: (E, IN, OUT)
    bias:   (E, 1, OUT)
    compute_dtype: optional dtype (e.g. jnp.bfloat16) for x/weight streaming;
                   accumulation is always f32, output keeps x's original dtype.
    """
    e, b, in_f = x.shape
    out_f = weight.shape[2]
    assert weight.shape == (e, in_f, out_f)
    assert bias.shape == (e, 1, out_f)

    out_dtype = x.dtype
    if compute_dtype is not None:
        x = x.astype(compute_dtype)
        weight = weight.astype(compute_dtype)
    bytes_per_el = jnp.dtype(x.dtype).itemsize

    eb, tm, tn, tk = _choose_tiles(e, b, in_f, out_f, bytes_per_el)

    # Pad every dim to a multiple of its tile: lane-dense (128-multiple) last
    # dims, sublane-multiple M, and E divisible by the ensemble group size.
    e_p = _round_up(e, eb)
    b_p = _round_up(b, tm)
    in_p = _round_up(in_f, tk)
    out_p = _round_up(out_f, tn)
    x_p = jnp.pad(x, ((0, e_p - e), (0, b_p - b), (0, in_p - in_f)))
    w_p = jnp.pad(weight, ((0, e_p - e), (0, in_p - in_f), (0, out_p - out_f)))
    b_p_arr = jnp.pad(bias, ((0, e_p - e), (0, 0), (0, out_p - out_f)))

    grid = (e_p // eb, b_p // tm, out_p // tn, in_p // tk)

    # Explicit VMEM budget (double-buffered ins/outs + f32 accumulator) with
    # headroom; capped so it is safe on v7x's smaller VMEM.
    vmem_need = (2 * (eb * tm * tk + eb * tk * tn + eb * tm * tn + eb * tn)
                 * bytes_per_el + eb * tm * tn * 4)
    vmem_limit = int(min(max(2 * vmem_need, 8 << 20), 48 << 20))

    out_padded = pl.pallas_call(
        _vectorized_linear_kernel,
        out_shape=jax.ShapeDtypeStruct((e_p, b_p, out_p), out_dtype),
        grid=grid,
        in_specs=[
            pl.BlockSpec((eb, tm, tk), lambda ei, i, j, k: (ei, i, k)),
            pl.BlockSpec((eb, tk, tn), lambda ei, i, j, k: (ei, k, j)),
            # bias index_map ignores k -> stays resident across the K loop.
            pl.BlockSpec((eb, 1, tn), lambda ei, i, j, k: (ei, 0, j)),
        ],
        out_specs=pl.BlockSpec((eb, tm, tn), lambda ei, i, j, k: (ei, i, j)),
        scratch_shapes=[pltpu.VMEM((eb, tm, tn), jnp.float32)],
        compiler_params=pltpu.CompilerParams(
            dimension_semantics=("parallel", "parallel", "parallel", "arbitrary"),
            vmem_limit_bytes=vmem_limit,
        ),
    )(x_p, w_p, b_p_arr)

    return out_padded[:e, :b, :out_f]


def init_params(key, ensemble_size: int, in_features: int, out_features: int):
    """Deterministic init mirroring the PyTorch module's reset_parameters.

    kaiming_uniform_(a=sqrt(5)) on a 2D (in, out) tensor is
    U(-1/sqrt(fan_in), 1/sqrt(fan_in)) where PyTorch's fan_in for an
    (in, out) matrix is its dim-1 (out_features) — reproduced for fidelity.
    """
    k_w, k_b = jax.random.split(key)
    fan_in = out_features
    bound = 1.0 / math.sqrt(fan_in) if fan_in > 0 else 0.0
    weight = jax.random.uniform(
        k_w, (ensemble_size, in_features, out_features),
        minval=-bound, maxval=bound, dtype=jnp.float32)
    bias = jax.random.uniform(
        k_b, (ensemble_size, 1, out_features),
        minval=-bound, maxval=bound, dtype=jnp.float32)
    return weight, bias


if __name__ == "__main__":
    key = jax.random.PRNGKey(0)

    # Test 1: module-like shapes (small ensemble of small linear layers), f32.
    e1, b1, in1, out1 = 4, 8, 32, 16
    k_x1, k_p1, k_x2, k_p2 = jax.random.split(key, 4)
    x1 = jax.random.normal(k_x1, (e1, b1, in1), dtype=jnp.float32)
    w1, bias1 = init_params(k_p1, e1, in1, out1)

    out_f32 = jax.block_until_ready(vectorized_linear(x1, w1, bias1))
    ref1 = jnp.einsum("ebi,eio->ebo", x1, w1) + bias1
    assert out_f32.shape == (e1, b1, out1)
    assert jnp.allclose(out_f32, ref1, atol=1e-5, rtol=1e-5), "f32 mismatch"

    # bf16 streaming path (f32 accumulation), looser tolerance.
    out_bf16 = jax.block_until_ready(
        vectorized_linear(x1, w1, bias1, compute_dtype=jnp.bfloat16))
    assert jnp.allclose(out_bf16, ref1, atol=5e-2, rtol=5e-2), "bf16 mismatch"

    # Test 2: odd, non-tile-aligned shapes to exercise the padding path.
    e2, b2, in2, out2 = 3, 5, 20, 7
    x2 = jax.random.normal(k_x2, (e2, b2, in2), dtype=jnp.float32)
    w2, bias2 = init_params(k_p2, e2, in2, out2)
    out2_arr = jax.block_until_ready(vectorized_linear(x2, w2, bias2))
    ref2 = jnp.einsum("ebi,eio->ebo", x2, w2) + bias2
    assert out2_arr.shape == (e2, b2, out2)
    assert jnp.allclose(out2_arr, ref2, atol=1e-5, rtol=1e-5), "padded mismatch"

    print("KERNEL_OK")
</pallas_src>

<mosaic_0001>
module attributes {stable_mosaic.version = 11 : i64} {
  func.func @_vectorized_linear_kernel(%arg0: i32, %arg1: i32, %arg2: i32, %arg3: i32, %arg4: memref<4x8x128xf32, #tpu.memory_space<vmem>>, %arg5: memref<4x128x128xf32, #tpu.memory_space<vmem>>, %arg6: memref<4x1x128xf32, #tpu.memory_space<vmem>>, %arg7: memref<4x8x128xf32, #tpu.memory_space<vmem>>, %arg8: memref<4x8x128xf32, #tpu.memory_space<vmem>>) attributes {dimension_semantics = [#tpu.dimension_semantics<parallel>, #tpu.dimension_semantics<parallel>, #tpu.dimension_semantics<parallel>, #tpu.dimension_semantics<arbitrary>], iteration_bounds = array<i64: 1, 1, 1, 1>, scalar_prefetch = 0 : i64, scratch_operands = 1 : i64, tpu.core_type = #tpu.core_type<tc>, window_params = [{transform_indices = @transform_0, window_bounds = array<i64: 4, 8, 128>}, {transform_indices = @transform_1, window_bounds = array<i64: 4, 128, 128>}, {transform_indices = @transform_2, window_bounds = array<i64: 4, 1, 128>}, {transform_indices = @transform_3, window_bounds = array<i64: 4, 8, 128>}]} {
    %c0_i32 = arith.constant 0 : i32
    %0 = arith.cmpi eq, %arg3, %c0_i32 : i32
    %1 = arith.extui %0 : i1 to i32
    %c0_i32_0 = arith.constant 0 : i32
    %2 = arith.cmpi ne, %1, %c0_i32_0 : i32
    scf.if %2 {
      %cst_14 = arith.constant 0.000000e+00 : f32
      %12 = vector.broadcast %cst_14 : f32 to vector<4x8x128xf32>
      %c0_15 = arith.constant 0 : index
      %c0_16 = arith.constant 0 : index
      %c0_17 = arith.constant 0 : index
      %13 = vector.load %arg8[%c0_15, %c0_16, %c0_17] : memref<4x8x128xf32, #tpu.memory_space<vmem>>, vector<4x8x128xf32>
      tpu.vector_store %arg8[%c0_15, %c0_16, %c0_17], %12 {strides = array<i32>} : memref<4x8x128xf32, #tpu.memory_space<vmem>>, vector<4x8x128xf32>,
    } else {
    }
    %c0 = arith.constant 0 : index
    %c0_1 = arith.constant 0 : index
    %c0_2 = arith.constant 0 : index
    %3 = vector.load %arg8[%c0, %c0_1, %c0_2] : memref<4x8x128xf32, #tpu.memory_space<vmem>>, vector<4x8x128xf32>
    %c0_3 = arith.constant 0 : index
    %c0_4 = arith.constant 0 : index
    %c0_5 = arith.constant 0 : index
    %4 = vector.load %arg4[%c0_3, %c0_4, %c0_5] : memref<4x8x128xf32, #tpu.memory_space<vmem>>, vector<4x8x128xf32>
    %c0_6 = arith.constant 0 : index
    %c0_7 = arith.constant 0 : index
    %c0_8 = arith.constant 0 : index
    %5 = vector.load %arg5[%c0_6, %c0_7, %c0_8] : memref<4x128x128xf32, #tpu.memory_space<vmem>>, vector<4x128x128xf32>
    "tpu.trace_start"() <{level = 10 : i32, message = "emk,ekn->emn"}> : () -> ()
    %cst = arith.constant dense<0.000000e+00> : vector<4x8x128xf32>
    %6 = tpu.matmul %4, %5, %cst {dimension_numbers = #tpu.dot_dimension_numbers<[2], [1], [1], [2], [0, 0, 0, 1, 1, 2], [0], [0]>} : vector<4x8x128xf32>, vector<4x128x128xf32>, vector<4x8x128xf32> -> vector<4x8x128xf32>
    "tpu.trace_stop"() : () -> ()
    %7 = arith.addf %3, %6 : vector<4x8x128xf32>
    %c0_9 = arith.constant 0 : index
    %c0_10 = arith.constant 0 : index
    %c0_11 = arith.constant 0 : index
    %8 = vector.load %arg8[%c0_9, %c0_10, %c0_11] : memref<4x8x128xf32, #tpu.memory_space<vmem>>, vector<4x8x128xf32>
    tpu.vector_store %arg8[%c0_9, %c0_10, %c0_11], %7 {strides = array<i32>} : memref<4x8x128xf32, #tpu.memory_space<vmem>>, vector<4x8x128xf32>,
    %c0_i32_12 = arith.constant 0 : i32
    %9 = arith.cmpi eq, %arg3, %c0_i32_12 : i32
    %10 = arith.extui %9 : i1 to i32
    %c0_i32_13 = arith.constant 0 : i32
    %11 = arith.cmpi ne, %10, %c0_i32_13 : i32
    scf.if %11 {
      %c0_14 = arith.constant 0 : index
      %c0_15 = arith.constant 0 : index
      %c0_16 = arith.constant 0 : index
      %12 = vector.load %arg8[%c0_14, %c0_15, %c0_16] : memref<4x8x128xf32, #tpu.memory_space<vmem>>, vector<4x8x128xf32>
      %c0_17 = arith.constant 0 : index
      %c0_18 = arith.constant 0 : index
      %c0_19 = arith.constant 0 : index
      %13 = vector.load %arg6[%c0_17, %c0_18, %c0_19] : memref<4x1x128xf32, #tpu.memory_space<vmem>>, vector<4x1x128xf32>
      %14 = vector.broadcast %13 : vector<4x1x128xf32> to vector<4x8x128xf32>
      %15 = arith.addf %12, %14 : vector<4x8x128xf32>
      %c0_20 = arith.constant 0 : index
      %c0_21 = arith.constant 0 : index
      %c0_22 = arith.constant 0 : index
      %16 = vector.load %arg7[%c0_20, %c0_21, %c0_22] : memref<4x8x128xf32, #tpu.memory_space<vmem>>, vector<4x8x128xf32>
      tpu.vector_store %arg7[%c0_20, %c0_21, %c0_22], %15 {strides = array<i32>} : memref<4x8x128xf32, #tpu.memory_space<vmem>>, vector<4x8x128xf32>,
    } else {
    }
    return
  }
  func.func @transform_0(%arg0: i32, %arg1: i32, %arg2: i32, %arg3: i32) -> (i32, i32, i32) {
    %c0_i32 = arith.constant 0 : i32
    return %arg0, %arg1, %arg3 : i32, i32, i32
  }
  func.func @transform_1(%arg0: i32, %arg1: i32, %arg2: i32, %arg3: i32) -> (i32, i32, i32) {
    %c0_i32 = arith.constant 0 : i32
    return %arg0, %arg3, %arg2 : i32, i32, i32
  }
  func.func @transform_2(%arg0: i32, %arg1: i32, %arg2: i32, %arg3: i32) -> (i32, i32, i32) {
    %c0_i32 = arith.constant 0 : i32
    %c0_i32_0 = arith.constant 0 : i32
    return %arg0, %c0_i32, %arg2 : i32, i32, i32
  }
  func.func @transform_3(%arg0: i32, %arg1: i32, %arg2: i32, %arg3: i32) -> (i32, i32, i32) {
    %c0_i32 = arith.constant 0 : i32
    return %arg0, %arg1, %arg2 : i32, i32, i32
  }
}

</mosaic_0001>

<llo_original>
// kernel: tpu_custom_call.1
$region0: #{tpu_custom_call.1}
  #allocation0 [shape = 'u32[]', space=smem, size = 0x4, offset = 0x4, fixed_abs, tag = 'smem constant byte address 0x4 - core index']
  #allocation1 [shape = 'u32[144,128]{1,0:T(1,128)}', space=vmem, size = 0x12000, scoped, tag = 'internal scratch']
  #allocation2 [shape = 'f32[4,8,128]{2,1,0:T(8,128)}', space=vmem, size = 0x4000, scoped, tag = 'scratch operand']
  %s0 = inlined_call_operand.hbm [shape: f32[4,8,128], index: 0, kind: input, shape index: {}]
  %s1 = inlined_call_operand.hbm [shape: f32[4,128,128], index: 1, kind: input, shape index: {}]
  %s2 = inlined_call_operand.vmem [shape: f32[4,1,128], index: 2, kind: input, shape index: {}]
  %s3 = inlined_call_operand.hbm [shape: f32[4,8,128], index: 3, kind: output, shape index: {}]
  %s4 = sld [smem:[#allocation0]]
  $region38: #{tpu_custom_call.1} parent=0
    _
  %s6 = ssub.s32 1, %s4
  %s7 = scalar_select 0, %s6, %s4
  $region1: #{tpu_custom_call.1} parent=0
    #allocation3 [shape = 'u8[16384]{0}', space=vmem, size = 0x4000, scoped, tag = 'input window, operand 0, single buffered']
    #allocation4 [shape = 's32[1]{0}', space=sflag, size = 0x4, scoped, tag = 'scoped memory for tpu_custom_call.1']
    #allocation5 [shape = 's32[1]{0}', space=sflag, size = 0x4, scoped, tag = 'scoped memory for tpu_custom_call.1']
    #allocation6 [shape = 'u8[262144]{0}', space=vmem, size = 0x40000, scoped, tag = 'input window, operand 1, single buffered']
    #allocation7 [shape = 's32[1]{0}', space=sflag, size = 0x4, scoped, tag = 'scoped memory for tpu_custom_call.1']
    #allocation8 [shape = 'u8[16384]{0}', space=vmem, size = 0x4000, scoped, tag = 'output window, operand 0, single buffered']
    %8 = vsyncpa [#allocation4], 0
    %9 = vsyncpa [#allocation7], 0
    %10 = vsyncpa [#allocation5], 0
    // Predicated region
    $region2: #{tpu_custom_call.1} parent=1 // pred_check
      _
    $region3: #{tpu_custom_call.1} parent=1 // pred_check_branch
      %12 = sbr.rel (0) target = $region5
    $region4: #{tpu_custom_call.1} parent=1 // pred_region
      %s14 = ssub.s32 512, 512
      %15 = vsyncadd [#allocation4], %s14
      %s16 = sshll.u32 [#allocation3], 4
      %s17 = int_to_ptr.vmem [resolvable:$true] %s16
      %22 = dma.hbm_to_vmem [thread:$0]  %s0, 512, %s17, [#allocation4], 128, 128, 8
    $region5: #{tpu_custom_call.1} parent=1 // pred_fallthru
      _
    // Predicated region
    $region6: #{tpu_custom_call.1} parent=1 // pred_check
      _
    $region7: #{tpu_custom_call.1} parent=1 // pred_check_branch
      %24 = sbr.rel (0) target = $region9
    $region8: #{tpu_custom_call.1} parent=1 // pred_region
      %s26 = ssub.s32 8192, 8192
      %27 = vsyncadd [#allocation7], %s26
      %s28 = sshll.u32 [#allocation6], 4
      %s29 = int_to_ptr.vmem [resolvable:$true] %s28
      %34 = dma.hbm_to_vmem [thread:$0]  %s1, 8192, %s29, [#allocation7], 128, 128, 8
    $region9: #{tpu_custom_call.1} parent=1 // pred_fallthru
      _
    // Predicated region
    $region10: #{tpu_custom_call.1} parent=1 // pred_check
      _
    $region11: #{tpu_custom_call.1} parent=1 // pred_check_branch
      %36 = sbr.rel (0) target = $region13
    $region12: #{tpu_custom_call.1} parent=1 // pred_region
      _
    $region13: #{tpu_custom_call.1} parent=1 // pred_fallthru
      _
    // Predicated region
    $region14: #{tpu_custom_call.1} parent=1 // pred_check
      _
    $region15: #{tpu_custom_call.1} parent=1 // pred_check_branch
      %38 = sbr.rel (0) target = $region17
    $region16: #{tpu_custom_call.1} parent=1 // pred_region
      %39 = dma.done [#allocation4], 512
    $region17: #{tpu_custom_call.1} parent=1 // pred_fallthru
      _
    // Predicated region
    $region18: #{tpu_custom_call.1} parent=1 // pred_check
      _
    $region19: #{tpu_custom_call.1} parent=1 // pred_check_branch
      %41 = sbr.rel (0) target = $region21
    $region20: #{tpu_custom_call.1} parent=1 // pred_region
      %42 = dma.done [#allocation7], 8192
    $region21: #{tpu_custom_call.1} parent=1 // pred_fallthru
      _
    %p43 = scmp.eq.s32.totalorder 0, 0
    // Predicated region
    $region22: #{tpu_custom_call.1} parent=1 // pred_check
      %p44 = pneg %p43
    $region23: #{tpu_custom_call.1} parent=1 // pred_check_branch
      %46 = sbr.rel (%p44) target = $region25
    $region24: #{tpu_custom_call.1} parent=1 // pred_region
      %47 = vst [vmem:[#allocation2] sm:$0xff] 0.0
      %48 = vst [vmem:[#allocation2 + $0x8] sm:$0xff] 0.0
      %49 = vst [vmem:[#allocation2 + $0x10] sm:$0xff] 0.0
      %50 = vst [vmem:[#allocation2 + $0x18] sm:$0xff] 0.0
    $region25: #{tpu_custom_call.1} parent=1 // pred_fallthru
      _
    %v51 = vld [vmem:[#allocation2] sm:$0xff]
    %v52 = vld [vmem:[#allocation2 + $0x8] sm:$0xff]
    %v53 = vld [vmem:[#allocation2 + $0x10] sm:$0xff]
    %v54 = vld [vmem:[#allocation2 + $0x18] sm:$0xff]
    %v55 = vld [vmem:[#allocation3] sm:$0xff]
    %v56 = vld [vmem:[#allocation3 + $0x8] sm:$0xff]
    %v57 = vld [vmem:[#allocation3 + $0x10] sm:$0xff]
    %v58 = vld [vmem:[#allocation3 + $0x18] sm:$0xff]
    %v59 = vld [vmem:[#allocation6] sm:$0xff]
    %v60 = vld [vmem:[#allocation6 + $0x8] sm:$0xff]
    %v61 = vld [vmem:[#allocation6 + $0x10] sm:$0xff]
    %v62 = vld [vmem:[#allocation6 + $0x18] sm:$0xff]
    %v63 = vld [vmem:[#allocation6 + $0x20] sm:$0xff]
    %v64 = vld [vmem:[#allocation6 + $0x28] sm:$0xff]
    %v65 = vld [vmem:[#allocation6 + $0x30] sm:$0xff]
    %v66 = vld [vmem:[#allocation6 + $0x38] sm:$0xff]
    %v67 = vld [vmem:[#allocation6 + $0x40] sm:$0xff]
    %v68 = vld [vmem:[#allocation6 + $0x48] sm:$0xff]
    %v69 = vld [vmem:[#allocation6 + $0x50] sm:$0xff]
    %v70 = vld [vmem:[#allocation6 + $0x58] sm:$0xff]
    %v71 = vld [vmem:[#allocation6 + $0x60] sm:$0xff]
    %v72 = vld [vmem:[#allocation6 + $0x68] sm:$0xff]
    %v73 = vld [vmem:[#allocation6 + $0x70] sm:$0xff]
    %v74 = vld [vmem:[#allocation6 + $0x78] sm:$0xff]
    %v75 = vld [vmem:[#allocation6 + $0x80] sm:$0xff]
    %v76 = vld [vmem:[#allocation6 + $0x88] sm:$0xff]
    %v77 = vld [vmem:[#allocation6 + $0x90] sm:$0xff]
    %v78 = vld [vmem:[#allocation6 + $0x98] sm:$0xff]
    %v79 = vld [vmem:[#allocation6 + $0xa0] sm:$0xff]
    %v80 = vld [vmem:[#allocation6 + $0xa8] sm:$0xff]
    %v81 = vld [vmem:[#allocation6 + $0xb0] sm:$0xff]
    %v82 = vld [vmem:[#allocation6 + $0xb8] sm:$0xff]
    %v83 = vld [vmem:[#allocation6 + $0xc0] sm:$0xff]
    %v84 = vld [vmem:[#allocation6 + $0xc8] sm:$0xff]
    %v85 = vld [vmem:[#allocation6 + $0xd0] sm:$0xff]
    %v86 = vld [vmem:[#allocation6 + $0xd8] sm:$0xff]
    %v87 = vld [vmem:[#allocation6 + $0xe0] sm:$0xff]
    %v88 = vld [vmem:[#allocation6 + $0xe8] sm:$0xff]
    %v89 = vld [vmem:[#allocation6 + $0xf0] sm:$0xff]
    %v90 = vld [vmem:[#allocation6 + $0xf8] sm:$0xff]
    %v91 = vld [vmem:[#allocation6 + $0x100] sm:$0xff]
    %v92 = vld [vmem:[#allocation6 + $0x108] sm:$0xff]
    %v93 = vld [vmem:[#allocation6 + $0x110] sm:$0xff]
    %v94 = vld [vmem:[#allocation6 + $0x118] sm:$0xff]
    %v95 = vld [vmem:[#allocation6 + $0x120] sm:$0xff]
    %v96 = vld [vmem:[#allocation6 + $0x128] sm:$0xff]
    %v97 = vld [vmem:[#allocation6 + $0x130] sm:$0xff]
    %v98 = vld [vmem:[#allocation6 + $0x138] sm:$0xff]
    %v99 = vld [vmem:[#allocation6 + $0x140] sm:$0xff]
    %v100 = vld [vmem:[#allocation6 + $0x148] sm:$0xff]
    %v101 = vld [vmem:[#allocation6 + $0x150] sm:$0xff]
    %v102 = vld [vmem:[#allocation6 + $0x158] sm:$0xff]
    %v103 = vld [vmem:[#allocation6 + $0x160] sm:$0xff]
    %v104 = vld [vmem:[#allocation6 + $0x168] sm:$0xff]
    %v105 = vld [vmem:[#allocation6 + $0x170] sm:$0xff]
    %v106 = vld [vmem:[#allocation6 + $0x178] sm:$0xff]
    %v107 = vld [vmem:[#allocation6 + $0x180] sm:$0xff]
    %v108 = vld [vmem:[#allocation6 + $0x188] sm:$0xff]
    %v109 = vld [vmem:[#allocation6 + $0x190] sm:$0xff]
    %v110 = vld [vmem:[#allocation6 + $0x198] sm:$0xff]
    %v111 = vld [vmem:[#allocation6 + $0x1a0] sm:$0xff]
    %v112 = vld [vmem:[#allocation6 + $0x1a8] sm:$0xff]
    %v113 = vld [vmem:[#allocation6 + $0x1b0] sm:$0xff]
    %v114 = vld [vmem:[#allocation6 + $0x1b8] sm:$0xff]
    %v115 = vld [vmem:[#allocation6 + $0x1c0] sm:$0xff]
    %v116 = vld [vmem:[#allocation6 + $0x1c8] sm:$0xff]
    %v117 = vld [vmem:[#allocation6 + $0x1d0] sm:$0xff]
    %v118 = vld [vmem:[#allocation6 + $0x1d8] sm:$0xff]
    %v119 = vld [vmem:[#allocation6 + $0x1e0] sm:$0xff]
    %v120 = vld [vmem:[#allocation6 + $0x1e8] sm:$0xff]
    %v121 = vld [vmem:[#allocation6 + $0x1f0] sm:$0xff]
    %v122 = vld [vmem:[#allocation6 + $0x1f8] sm:$0xff]
    %123 = vmatprep.subr.mxu0 0.0
    %124 = vmatpush1.msra.mxu0 %v59
    %125 = vmatprep.subr.mxu0 0.0
    %126 = vmatpush1.msra.mxu0 %v60
    %127 = vmatprep.subr.mxu0 0.0
    %128 = vmatpush1.msra.mxu0 %v61
    %129 = vmatprep.subr.mxu0 0.0
    %130 = vmatpush1.msra.mxu0 %v62
    %131 = vmatprep.subr.mxu0 0.0
    %132 = vmatpush1.msra.mxu0 %v63
    %133 = vmatprep.subr.mxu0 0.0
    %134 = vmatpush1.msra.mxu0 %v64
    %135 = vmatprep.subr.mxu0 0.0
    %136 = vmatpush1.msra.mxu0 %v65
    %137 = vmatprep.subr.mxu0 0.0
    %138 = vmatpush1.msra.mxu0 %v66
    %139 = vmatprep.subr.mxu0 0.0
    %140 = vmatpush1.msra.mxu0 %v67
    %141 = vmatprep.subr.mxu0 0.0
    %142 = vmatpush1.msra.mxu0 %v68
    %143 = vmatprep.subr.mxu0 0.0
    %144 = vmatpush1.msra.mxu0 %v69
    %145 = vmatprep.subr.mxu0 0.0
    %146 = vmatpush1.msra.mxu0 %v70
    %147 = vmatprep.subr.mxu0 0.0
    %148 = vmatpush1.msra.mxu0 %v71
    %149 = vmatprep.subr.mxu0 0.0
    %150 = vmatpush1.msra.mxu0 %v72
    %151 = vmatprep.subr.mxu0 0.0
    %152 = vmatpush1.msra.mxu0 %v73
    %153 = vmatprep.subr.mxu0 0.0
    %154 = vmatpush1.msra.mxu0 %v74
    %155 = vmatprep.subr.mxu0 0.0
    %156 = vmatpush1.msra.mxu0 0.0
    %157 = vmatprep.subr.mxu0 0.0
    %158 = vmatpush1.msra.mxu0 0.0
    %159 = vmatprep.subr.mxu0 0.0
    %160 = vmatpush1.msra.mxu0 0.0
    %161 = vmatprep.subr.mxu0 0.0
    %162 = vmatpush1.msra.mxu0 0.0
    %163 = vmatprep.subr.mxu0 0.0
    %164 = vmatpush1.msra.mxu0 0.0
    %165 = vmatprep.subr.mxu0 0.0
    %166 = vmatpush1.msra.mxu0 0.0
    %167 = vmatprep.subr.mxu0 0.0
    %168 = vmatpush1.msra.mxu0 0.0
    %169 = vmatprep.subr.mxu0 0.0
    %170 = vmatpush1.msra.mxu0 0.0
    %171 = vmatprep.subr.mxu0 0.0
    %172 = vmatpush1.msra.mxu0 0.0
    %173 = vmatprep.subr.mxu0 0.0
    %174 = vmatpush1.msra.mxu0 0.0
    %175 = vmatprep.subr.mxu0 0.0
    %176 = vmatpush1.msra.mxu0 0.0
    %177 = vmatprep.subr.mxu0 0.0
    %178 = vmatpush1.msra.mxu0 0.0
    %179 = vmatprep.subr.mxu0 0.0
    %180 = vmatpush1.msra.mxu0 0.0
    %181 = vmatprep.subr.mxu0 0.0
    %182 = vmatpush1.msra.mxu0 0.0
    %183 = vmatprep.subr.mxu0 0.0
    %184 = vmatpush1.msra.mxu0 0.0
    %185 = vmatprep.subr.mxu0 0.0
    %186 = vmatpush1.msra.mxu0 0.0
    %187 = vmatprep.mubr.f32.mxu0 0.0
    %188 = vmatmul.mubr.f32.gmra.mrb[0].mxu0 %v55
    %v189 = vpop.f32.mrb[0].mxu0
    %v190 = vadd.f32 0.0, %v189
    %v191 = vpop.f32.mrb[0].mxu0
    %192 = vdwg.mxu0
    %193 = vmatprep.subr.mxu0 0.0
    %194 = vmatpush1.msra.mxu0 %v75
    %195 = vmatprep.subr.mxu0 0.0
    %196 = vmatpush1.msra.mxu0 %v76
    %197 = vmatprep.subr.mxu0 0.0
    %198 = vmatpush1.msra.mxu0 %v77
    %199 = vmatprep.subr.mxu0 0.0
    %200 = vmatpush1.msra.mxu0 %v78
    %201 = vmatprep.subr.mxu0 0.0
    %202 = vmatpush1.msra.mxu0 %v79
    %203 = vmatprep.subr.mxu0 0.0
    %204 = vmatpush1.msra.mxu0 %v80
    %205 = vmatprep.subr.mxu0 0.0
    %206 = vmatpush1.msra.mxu0 %v81
    %207 = vmatprep.subr.mxu0 0.0
    %208 = vmatpush1.msra.mxu0 %v82
    %209 = vmatprep.subr.mxu0 0.0
    %210 = vmatpush1.msra.mxu0 %v83
    %211 = vmatprep.subr.mxu0 0.0
    %212 = vmatpush1.msra.mxu0 %v84
    %213 = vmatprep.subr.mxu0 0.0
    %214 = vmatpush1.msra.mxu0 %v85
    %215 = vmatprep.subr.mxu0 0.0
    %216 = vmatpush1.msra.mxu0 %v86
    %217 = vmatprep.subr.mxu0 0.0
    %218 = vmatpush1.msra.mxu0 %v87
    %219 = vmatprep.subr.mxu0 0.0
    %220 = vmatpush1.msra.mxu0 %v88
    %221 = vmatprep.subr.mxu0 0.0
    %222 = vmatpush1.msra.mxu0 %v89
    %223 = vmatprep.subr.mxu0 0.0
    %224 = vmatpush1.msra.mxu0 %v90
    %225 = vmatprep.subr.mxu0 0.0
    %226 = vmatpush1.msra.mxu0 0.0
    %227 = vmatprep.subr.mxu0 0.0
    %228 = vmatpush1.msra.mxu0 0.0
    %229 = vmatprep.subr.mxu0 0.0
    %230 = vmatpush1.msra.mxu0 0.0
    %231 = vmatprep.subr.mxu0 0.0
    %232 = vmatpush1.msra.mxu0 0.0
    %233 = vmatprep.subr.mxu0 0.0
    %234 = vmatpush1.msra.mxu0 0.0
    %235 = vmatprep.subr.mxu0 0.0
    %236 = vmatpush1.msra.mxu0 0.0
    %237 = vmatprep.subr.mxu0 0.0
    %238 = vmatpush1.msra.mxu0 0.0
    %239 = vmatprep.subr.mxu0 0.0
    %240 = vmatpush1.msra.mxu0 0.0
    %241 = vmatprep.subr.mxu0 0.0
    %242 = vmatpush1.msra.mxu0 0.0
    %243 = vmatprep.subr.mxu0 0.0
    %244 = vmatpush1.msra.mxu0 0.0
    %245 = vmatprep.subr.mxu0 0.0
    %246 = vmatpush1.msra.mxu0 0.0
    %247 = vmatprep.subr.mxu0 0.0
    %248 = vmatpush1.msra.mxu0 0.0
    %249 = vmatprep.subr.mxu0 0.0
    %250 = vmatpush1.msra.mxu0 0.0
    %251 = vmatprep.subr.mxu0 0.0
    %252 = vmatpush1.msra.mxu0 0.0
    %253 = vmatprep.subr.mxu0 0.0
    %254 = vmatpush1.msra.mxu0 0.0
    %255 = vmatprep.subr.mxu0 0.0
    %256 = vmatpush1.msra.mxu0 0.0
    %257 = vmatprep.mubr.f32.mxu0 0.0
    %258 = vmatmul.mubr.f32.gmra.mrb[0].mxu0 %v56
    %v259 = vpop.f32.mrb[0].mxu0
    %v260 = vadd.f32 0.0, %v259
    %v261 = vpop.f32.mrb[0].mxu0
    %262 = vdwg.mxu0
    %263 = vmatprep.subr.mxu0 0.0
    %264 = vmatpush1.msra.mxu0 %v91
    %265 = vmatprep.subr.mxu0 0.0
    %266 = vmatpush1.msra.mxu0 %v92
    %267 = vmatprep.subr.mxu0 0.0
    %268 = vmatpush1.msra.mxu0 %v93
    %269 = vmatprep.subr.mxu0 0.0
    %270 = vmatpush1.msra.mxu0 %v94
    %271 = vmatprep.subr.mxu0 0.0
    %272 = vmatpush1.msra.mxu0 %v95
    %273 = vmatprep.subr.mxu0 0.0
    %274 = vmatpush1.msra.mxu0 %v96
    %275 = vmatprep.subr.mxu0 0.0
    %276 = vmatpush1.msra.mxu0 %v97
    %277 = vmatprep.subr.mxu0 0.0
    %278 = vmatpush1.msra.mxu0 %v98
    %279 = vmatprep.subr.mxu0 0.0
    %280 = vmatpush1.msra.mxu0 %v99
    %281 = vmatprep.subr.mxu0 0.0
    %282 = vmatpush1.msra.mxu0 %v100
    %283 = vmatprep.subr.mxu0 0.0
    %284 = vmatpush1.msra.mxu0 %v101
    %285 = vmatprep.subr.mxu0 0.0
    %286 = vmatpush1.msra.mxu0 %v102
    %287 = vmatprep.subr.mxu0 0.0
    %288 = vmatpush1.msra.mxu0 %v103
    %289 = vmatprep.subr.mxu0 0.0
    %290 = vmatpush1.msra.mxu0 %v104
    %291 = vmatprep.subr.mxu0 0.0
    %292 = vmatpush1.msra.mxu0 %v105
    %293 = vmatprep.subr.mxu0 0.0
    %294 = vmatpush1.msra.mxu0 %v106
    %295 = vmatprep.subr.mxu0 0.0
    %296 = vmatpush1.msra.mxu0 0.0
    %297 = vmatprep.subr.mxu0 0.0
    %298 = vmatpush1.msra.mxu0 0.0
    %299 = vmatprep.subr.mxu0 0.0
    %300 = vmatpush1.msra.mxu0 0.0
    %301 = vmatprep.subr.mxu0 0.0
    %302 = vmatpush1.msra.mxu0 0.0
    %303 = vmatprep.subr.mxu0 0.0
    %304 = vmatpush1.msra.mxu0 0.0
    %305 = vmatprep.subr.mxu0 0.0
    %306 = vmatpush1.msra.mxu0 0.0
    %307 = vmatprep.subr.mxu0 0.0
    %308 = vmatpush1.msra.mxu0 0.0
    %309 = vmatprep.subr.mxu0 0.0
    %310 = vmatpush1.msra.mxu0 0.0
    %311 = vmatprep.subr.mxu0 0.0
    %312 = vmatpush1.msra.mxu0 0.0
    %313 = vmatprep.subr.mxu0 0.0
    %314 = vmatpush1.msra.mxu0 0.0
    %315 = vmatprep.subr.mxu0 0.0
    %316 = vmatpush1.msra.mxu0 0.0
    %317 = vmatprep.subr.mxu0 0.0
    %318 = vmatpush1.msra.mxu0 0.0
    %319 = vmatprep.subr.mxu0 0.0
    %320 = vmatpush1.msra.mxu0 0.0
    %321 = vmatprep.subr.mxu0 0.0
    %322 = vmatpush1.msra.mxu0 0.0
    %323 = vmatprep.subr.mxu0 0.0
    %324 = vmatpush1.msra.mxu0 0.0
    %325 = vmatprep.subr.mxu0 0.0
    %326 = vmatpush1.msra.mxu0 0.0
    %327 = vmatprep.mubr.f32.mxu0 0.0
    %328 = vmatmul.mubr.f32.gmra.mrb[0].mxu0 %v57
    %v329 = vpop.f32.mrb[0].mxu0
    %v330 = vadd.f32 0.0, %v329
    %v331 = vpop.f32.mrb[0].mxu0
    %332 = vdwg.mxu0
    %333 = vmatprep.subr.mxu0 0.0
    %334 = vmatpush1.msra.mxu0 %v107
    %335 = vmatprep.subr.mxu0 0.0
    %336 = vmatpush1.msra.mxu0 %v108
    %337 = vmatprep.subr.mxu0 0.0
    %338 = vmatpush1.msra.mxu0 %v109
    %339 = vmatprep.subr.mxu0 0.0
    %340 = vmatpush1.msra.mxu0 %v110
    %341 = vmatprep.subr.mxu0 0.0
    %342 = vmatpush1.msra.mxu0 %v111
    %343 = vmatprep.subr.mxu0 0.0
    %344 = vmatpush1.msra.mxu0 %v112
    %345 = vmatprep.subr.mxu0 0.0
    %346 = vmatpush1.msra.mxu0 %v113
    %347 = vmatprep.subr.mxu0 0.0
    %348 = vmatpush1.msra.mxu0 %v114
    %349 = vmatprep.subr.mxu0 0.0
    %350 = vmatpush1.msra.mxu0 %v115
    %351 = vmatprep.subr.mxu0 0.0
    %352 = vmatpush1.msra.mxu0 %v116
    %353 = vmatprep.subr.mxu0 0.0
    %354 = vmatpush1.msra.mxu0 %v117
    %355 = vmatprep.subr.mxu0 0.0
    %356 = vmatpush1.msra.mxu0 %v118
    %357 = vmatprep.subr.mxu0 0.0
    %358 = vmatpush1.msra.mxu0 %v119
    %359 = vmatprep.subr.mxu0 0.0
    %360 = vmatpush1.msra.mxu0 %v120
    %361 = vmatprep.subr.mxu0 0.0
    %362 = vmatpush1.msra.mxu0 %v121
    %363 = vmatprep.subr.mxu0 0.0
    %364 = vmatpush1.msra.mxu0 %v122
    %365 = vmatprep.subr.mxu0 0.0
    %366 = vmatpush1.msra.mxu0 0.0
    %367 = vmatprep.subr.mxu0 0.0
    %368 = vmatpush1.msra.mxu0 0.0
    %369 = vmatprep.subr.mxu0 0.0
    %370 = vmatpush1.msra.mxu0 0.0
    %371 = vmatprep.subr.mxu0 0.0
    %372 = vmatpush1.msra.mxu0 0.0
    %373 = vmatprep.subr.mxu0 0.0
    %374 = vmatpush1.msra.mxu0 0.0
    %375 = vmatprep.subr.mxu0 0.0
    %376 = vmatpush1.msra.mxu0 0.0
    %377 = vmatprep.subr.mxu0 0.0
    %378 = vmatpush1.msra.mxu0 0.0
    %379 = vmatprep.subr.mxu0 0.0
    %380 = vmatpush1.msra.mxu0 0.0
    %381 = vmatprep.subr.mxu0 0.0
    %382 = vmatpush1.msra.mxu0 0.0
    %383 = vmatprep.subr.mxu0 0.0
    %384 = vmatpush1.msra.mxu0 0.0
    %385 = vmatprep.subr.mxu0 0.0
    %386 = vmatpush1.msra.mxu0 0.0
    %387 = vmatprep.subr.mxu0 0.0
    %388 = vmatpush1.msra.mxu0 0.0
    %389 = vmatprep.subr.mxu0 0.0
    %390 = vmatpush1.msra.mxu0 0.0
    %391 = vmatprep.subr.mxu0 0.0
    %392 = vmatpush1.msra.mxu0 0.0
    %393 = vmatprep.subr.mxu0 0.0
    %394 = vmatpush1.msra.mxu0 0.0
    %395 = vmatprep.subr.mxu0 0.0
    %396 = vmatpush1.msra.mxu0 0.0
    %397 = vmatprep.mubr.f32.mxu0 0.0
    %398 = vmatmul.mubr.f32.gmra.mrb[0].mxu0 %v58
    %v399 = vpop.f32.mrb[0].mxu0
    %v400 = vadd.f32 0.0, %v399
    %v401 = vpop.f32.mrb[0].mxu0
    %402 = vdwg.mxu0
    %v403 = vadd.f32 %v51, %v190
    %v404 = vadd.f32 %v52, %v260
    %v405 = vadd.f32 %v53, %v330
    %v406 = vadd.f32 %v54, %v400
    %407 = vst [vmem:[#allocation2] sm:$0xff] %v403
    %408 = vst [vmem:[#allocation2 + $0x8] sm:$0xff] %v404
    %409 = vst [vmem:[#allocation2 + $0x10] sm:$0xff] %v405
    %410 = vst [vmem:[#allocation2 + $0x18] sm:$0xff] %v406
    // Predicated region
    $region26: #{tpu_custom_call.1} parent=1 // pred_check
      %p411 = pneg %p43
    $region27: #{tpu_custom_call.1} parent=1 // pred_check_branch
      %413 = sbr.rel (%p411) target = $region29
    $region28: #{tpu_custom_call.1} parent=1 // pred_region
      %v414 = vld [vmem:[#allocation2] sm:$0xff]
      %v415 = vld [vmem:[#allocation2 + $0x8] sm:$0xff]
      %v416 = vld [vmem:[#allocation2 + $0x10] sm:$0xff]
      %v417 = vld [vmem:[#allocation2 + $0x18] sm:$0xff]
      %v418 = vld [vmem:[%s2] sm:$0x1]
      %v419 = vld [vmem:[%s2 + $0x1] sm:$0x1]
      %v420 = vld [vmem:[%s2 + $0x2] sm:$0x1]
      %v421 = vld [vmem:[%s2 + $0x3] sm:$0x1]
      %v426 = vlaneseq
      %v427 = vshrl.u32 %v426, 7
      %v428 = vsub.s32 0, %v427
      %v429 = vrot.slane %v418, %v428
      %v430 = vlaneseq
      %v431 = vshrl.u32 %v430, 7
      %v432 = vsub.s32 0, %v431
      %v433 = vrot.slane %v419, %v432
      %v434 = vlaneseq
      %v435 = vshrl.u32 %v434, 7
      %v436 = vsub.s32 0, %v435
      %v437 = vrot.slane %v420, %v436
      %v438 = vlaneseq
      %v439 = vshrl.u32 %v438, 7
      %v440 = vsub.s32 0, %v439
      %v441 = vrot.slane %v421, %v440
      %v446 = vadd.f32 %v414, %v429
      %v447 = vadd.f32 %v415, %v433
      %v448 = vadd.f32 %v416, %v437
      %v449 = vadd.f32 %v417, %v441
      %450 = vst [vmem:[#allocation8] sm:$0xff] %v446
      %451 = vst [vmem:[#allocation8 + $0x8] sm:$0xff] %v447
      %452 = vst [vmem:[#allocation8 + $0x10] sm:$0xff] %v448
      %453 = vst [vmem:[#allocation8 + $0x18] sm:$0xff] %v449
    $region29: #{tpu_custom_call.1} parent=1 // pred_fallthru
      _
    // Predicated region
    $region30: #{tpu_custom_call.1} parent=1 // pred_check
      _
    $region31: #{tpu_custom_call.1} parent=1 // pred_check_branch
      %455 = sbr.rel (0) target = $region33
    $region32: #{tpu_custom_call.1} parent=1 // pred_region
      %s457 = ssub.s32 512, 512
      %458 = vsyncadd [#allocation5], %s457
      %s459 = sshll.u32 [#allocation8], 4
      %s460 = int_to_ptr.vmem [resolvable:$true] %s459
      %465 = dma.vmem_to_hbm [thread:$0]  %s460, 512, %s3, [#allocation5], 128, 128, 8
    $region33: #{tpu_custom_call.1} parent=1 // pred_fallthru
      _
    // Predicated region
    $region34: #{tpu_custom_call.1} parent=1 // pred_check
      _
    $region35: #{tpu_custom_call.1} parent=1 // pred_check_branch
      %467 = sbr.rel (0) target = $region37
    $region36: #{tpu_custom_call.1} parent=1 // pred_region
      %468 = dma.done [#allocation5], 512
    $region37: #{tpu_custom_call.1} parent=1 // pred_fallthru
      _
    %469 = vsyncpa [#allocation4], 1
    %470 = vsyncpa [#allocation7], 1
    %471 = vsyncpa [#allocation5], 1

</llo_original>
